<compile_context>
chip_gen: v7x
topology: tpu7x:2x2x1
jax: 0.10.0
libtpu: 0.0.40
codegen_flags: <defaults>
</compile_context>

<pallas_src>
import jax
import jax.numpy as jnp
from jax.experimental import pallas as pl
from jax.experimental.pallas import tpu as pltpu

hidden_size = 64
num_classes = 10

_LANE = 128  # lane width: pad hidden / class / feature axes to full lanes


def _round_up(n, m):
    return pl.cdiv(n, m) * m


def attention_model_kernel(x_ref, w1_ref, b1_ref, w2_ref, b2_ref, out_ref):
    # Cast the tile after it lands in VMEM (free under the DMA; lets callers pass
    # bf16 x and halve the dominant HBM read without a wrapper-side pass).
    x = x_ref[...].astype(jnp.float32)

    # Linear 1: [TB, F] @ [F, Hp] + [1, Hp]   (MXU, f32 accumulation)
    h = jnp.dot(x, w1_ref[...], preferred_element_type=jnp.float32) + b1_ref[...]

    # Softmax over dim=1 (hidden axis), numerically stable.
    # Padded hidden columns carry bias -1e30 -> exp underflows to exactly 0.
    m = jnp.max(h, axis=1, keepdims=True)
    e = jnp.exp(h - m)
    denom = jnp.sum(e, axis=1, keepdims=True)
    p = e / denom  # exact division; not on the critical path of this HBM-bound kernel

    # Linear 2: [TB, Hp] @ [Hp, CP] + [1, CP]  (class axis zero-padded to a lane)
    out = jnp.dot(p, w2_ref[...], preferred_element_type=jnp.float32) + b2_ref[...]
    out_ref[...] = out.astype(out_ref.dtype)


def prepare_attention_params(w1, b1, w2, b2):
    """One-time parameter prep, hoisted out of the forward call path.

    PyTorch layouts: w1 [H, F], b1 [H], w2 [C, H], b2 [C].
    Returns lane-padded, row-major f32 operands:
      w1_t [F_pad, H_pad]  (zero-padded rows/cols)
      b1_r [1,  H_pad]     (padded hidden slots get -1e30 so softmax contributes 0)
      w2_t [H_pad, C_pad]  (zero-padded rows/cols)
      b2_r [1,  C_pad]
    """
    H, F = w1.shape
    C = w2.shape[0]
    F_pad = _round_up(F, _LANE)
    H_pad = _round_up(H, _LANE)
    C_pad = _round_up(C, _LANE)

    w1_t = jnp.zeros((F_pad, H_pad), jnp.float32).at[:F, :H].set(
        jnp.asarray(w1, jnp.float32).T)
    b1_r = jnp.full((1, H_pad), -1e30, jnp.float32).at[:, :H].set(
        jnp.asarray(b1, jnp.float32).reshape(1, H))
    w2_t = jnp.zeros((H_pad, C_pad), jnp.float32).at[:H, :C].set(
        jnp.asarray(w2, jnp.float32).T)
    b2_r = jnp.zeros((1, C_pad), jnp.float32).at[:, :C].set(
        jnp.asarray(b2, jnp.float32))

    return dict(w1_t=w1_t, b1_r=b1_r, w2_t=w2_t, b2_r=b2_r,
                in_features=F, features_padded=F_pad,
                hidden=H, hidden_padded=H_pad,
                classes=C, classes_padded=C_pad)


def attention_model_forward(x, params, *, batch_tile=1024, slice_classes=True):
    """x: [B, F] (or [B, F_pad] if pre-padded upstream). Returns [B, C]
    (or the lane-padded [B, C_pad] if slice_classes=False, for fusion at the
    consumer)."""
    B, Fx = x.shape
    F = params["in_features"]
    F_pad = params["features_padded"]
    H_pad = params["hidden_padded"]
    C = params["classes"]
    CP = params["classes_padded"]

    if Fx == F_pad:
        w1_t = params["w1_t"]
    elif Fx == F:
        # Caller did not pre-pad the feature axis.  Slice the tiny resident
        # weight instead of padding x (no extra HBM pass over x).
        # TODO(synk): pad x's feature axis upstream once for clean (8,128) layout.
        w1_t = params["w1_t"][:F]
    else:
        raise ValueError(f"x feature dim {Fx} does not match params ({F}/{F_pad})")

    # --- batch tile selection ----------------------------------------------
    # Big tiles amortize the ~0.35 us per-grid-step overhead; clip for small B,
    # but never collapse to a single grid step (so the 'parallel' axis actually
    # shards across both TensorCores on v7x).
    tb = min(_round_up(batch_tile, 8), _round_up(B, 8))
    if B > 8 and pl.cdiv(B, tb) < 2:
        tb = _round_up(pl.cdiv(B, 2), 8)
    grid = (pl.cdiv(B, tb),)
    # Note: the last block may be partial; garbage rows >= B stay in-kernel and
    # their stores are masked by Pallas, so they never reach the output.

    # --- VMEM forward-proofing (only matters for very large tb / F) ---------
    itemsize = jnp.dtype(x.dtype).itemsize
    footprint = (2 * (tb * Fx * itemsize + tb * CP * 4)          # x + out, double-buffered
                 + 2 * 4 * (Fx * H_pad + H_pad + H_pad * CP + CP))  # resident params
    vmem_limit = None
    if footprint > 12 * 1024 * 1024:
        vmem_limit = min(int(footprint * 3 // 2), 48 * 1024 * 1024)

    cost = pl.CostEstimate(
        flops=2 * B * Fx * H_pad + 2 * B * H_pad * CP + 6 * B * H_pad,
        transcendentals=B * H_pad,
        bytes_accessed=(itemsize * B * Fx
                        + 4 * (Fx * H_pad + H_pad + H_pad * CP + CP + B * CP)),
    )

    out = pl.pallas_call(
        attention_model_kernel,
        out_shape=jax.ShapeDtypeStruct((B, CP), jnp.float32),
        grid=grid,
        in_specs=[
            pl.BlockSpec((tb, Fx), lambda i: (i, 0)),     # x: tiled over batch
            pl.BlockSpec((Fx, H_pad), lambda i: (0, 0)),  # W1^T: resident
            pl.BlockSpec((1, H_pad), lambda i: (0, 0)),   # b1 (padded w/ -1e30)
            pl.BlockSpec((H_pad, CP), lambda i: (0, 0)),  # W2^T (lane-padded)
            pl.BlockSpec((1, CP), lambda i: (0, 0)),      # b2 (lane-padded)
        ],
        out_specs=pl.BlockSpec((tb, CP), lambda i: (i, 0)),
        compiler_params=pltpu.CompilerParams(
            dimension_semantics=("parallel",),   # batch tiles are independent
            vmem_limit_bytes=vmem_limit),
        cost_estimate=cost,
    )(x, w1_t, params["b1_r"], params["w2_t"], params["b2_r"])

    if slice_classes:
        return out[:, :C]
    return out  # lane-padded [B, CP]; slice/fuse at the consumer


def _reference(x, w1, b1, w2, b2):
    h = x.astype(jnp.float32) @ w1.T + b1
    h = h - jnp.max(h, axis=1, keepdims=True)
    e = jnp.exp(h)
    p = e / jnp.sum(e, axis=1, keepdims=True)
    return p @ w2.T + b2


if __name__ == "__main__":
    key = jax.random.PRNGKey(0)
    k_x, k_w1, k_b1, k_w2, k_b2 = jax.random.split(key, 5)

    batch = 256
    in_features = 256  # LazyLinear infers this from the first input

    # Deterministic "PyTorch-like" uniform init: U(-1/sqrt(fan_in), 1/sqrt(fan_in)).
    bound1 = 1.0 / jnp.sqrt(float(in_features))
    bound2 = 1.0 / jnp.sqrt(float(hidden_size))
    x = jax.random.normal(k_x, (batch, in_features), dtype=jnp.float32)
    w1 = jax.random.uniform(k_w1, (hidden_size, in_features), jnp.float32, -bound1, bound1)
    b1 = jax.random.uniform(k_b1, (hidden_size,), jnp.float32, -bound1, bound1)
    w2 = jax.random.uniform(k_w2, (num_classes, hidden_size), jnp.float32, -bound2, bound2)
    b2 = jax.random.uniform(k_b2, (num_classes,), jnp.float32, -bound2, bound2)

    # One-time (hoisted) parameter prep: transposes, bias reshapes, lane padding.
    params = prepare_attention_params(w1, b1, w2, b2)

    # Default batch_tile=1024 clips to 256 here, then splits to 128 so the grid
    # has 2 steps (both TensorCores used on v7x; pipelined path exercised).
    out = attention_model_forward(x, params)
    out = jax.block_until_ready(out)

    ref = _reference(x, w1, b1, w2, b2)
    assert out.shape == (batch, num_classes), out.shape
    err = float(jnp.max(jnp.abs(out - ref)))
    assert jnp.allclose(out, ref, atol=1e-5, rtol=1e-5), err

    print("KERNEL_OK")
</pallas_src>

<mosaic_0001>
module attributes {stable_mosaic.version = 11 : i64} {
  func.func @attention_model_kernel(%arg0: i32, %arg1: memref<128x256xf32, #tpu.memory_space<vmem>>, %arg2: memref<256x128xf32, #tpu.memory_space<vmem>>, %arg3: memref<1x128xf32, #tpu.memory_space<vmem>>, %arg4: memref<128x128xf32, #tpu.memory_space<vmem>>, %arg5: memref<1x128xf32, #tpu.memory_space<vmem>>, %arg6: memref<128x128xf32, #tpu.memory_space<vmem>>) attributes {dimension_semantics = [#tpu.dimension_semantics<parallel>], iteration_bounds = array<i64: 2>, scalar_prefetch = 0 : i64, scratch_operands = 0 : i64, tpu.core_type = #tpu.core_type<tc>, window_params = [{transform_indices = @transform_0, window_bounds = array<i64: 128, 256>}, {pipeline_mode = #tpu.pipeline_mode<synchronous>, transform_indices = @transform_1, window_bounds = array<i64: 256, 128>}, {pipeline_mode = #tpu.pipeline_mode<synchronous>, transform_indices = @transform_2, window_bounds = array<i64: 1, 128>}, {pipeline_mode = #tpu.pipeline_mode<synchronous>, transform_indices = @transform_3, window_bounds = array<i64: 128, 128>}, {pipeline_mode = #tpu.pipeline_mode<synchronous>, transform_indices = @transform_4, window_bounds = array<i64: 1, 128>}, {transform_indices = @transform_5, window_bounds = array<i64: 128, 128>}]} {
    %c0 = arith.constant 0 : index
    %c0_0 = arith.constant 0 : index
    %0 = vector.load %arg1[%c0, %c0_0] : memref<128x256xf32, #tpu.memory_space<vmem>>, vector<128x256xf32>
    %c0_1 = arith.constant 0 : index
    %c0_2 = arith.constant 0 : index
    %1 = vector.load %arg2[%c0_1, %c0_2] : memref<256x128xf32, #tpu.memory_space<vmem>>, vector<256x128xf32>
    %cst = arith.constant dense<0.000000e+00> : vector<128x128xf32>
    %2 = tpu.matmul %0, %1, %cst {dimension_numbers = #tpu.dot_dimension_numbers<[1], [0], [0], [1], [0, 0, 1, 1], [], []>} : vector<128x256xf32>, vector<256x128xf32>, vector<128x128xf32> -> vector<128x128xf32>
    %c0_3 = arith.constant 0 : index
    %c0_4 = arith.constant 0 : index
    %3 = vector.load %arg3[%c0_3, %c0_4] : memref<1x128xf32, #tpu.memory_space<vmem>>, vector<1x128xf32>
    %4 = vector.broadcast %3 : vector<1x128xf32> to vector<128x128xf32>
    %5 = arith.addf %2, %4 : vector<128x128xf32>
    %cst_5 = arith.constant dense<0xFF800000> : vector<128xf32>
    %6 = vector.multi_reduction <maximumf>, %5, %cst_5 [1] : vector<128x128xf32> to vector<128xf32>
    %7 = vector.shape_cast %6 : vector<128xf32> to vector<128x1xf32>
    %8 = vector.broadcast %7 : vector<128x1xf32> to vector<128x128xf32>
    %9 = arith.subf %5, %8 : vector<128x128xf32>
    %10 = math.exp %9 : vector<128x128xf32>
    %cst_6 = arith.constant dense<0.000000e+00> : vector<128xf32>
    %11 = vector.multi_reduction <add>, %10, %cst_6 [1] : vector<128x128xf32> to vector<128xf32>
    %12 = vector.shape_cast %11 : vector<128xf32> to vector<128x1xf32>
    %13 = vector.broadcast %12 : vector<128x1xf32> to vector<128x128xf32>
    %14 = arith.divf %10, %13 : vector<128x128xf32>
    %c0_7 = arith.constant 0 : index
    %c0_8 = arith.constant 0 : index
    %15 = vector.load %arg4[%c0_7, %c0_8] : memref<128x128xf32, #tpu.memory_space<vmem>>, vector<128x128xf32>
    %cst_9 = arith.constant dense<0.000000e+00> : vector<128x128xf32>
    %16 = tpu.matmul %14, %15, %cst_9 {dimension_numbers = #tpu.dot_dimension_numbers<[1], [0], [0], [1], [0, 0, 1, 1], [], []>} : vector<128x128xf32>, vector<128x128xf32>, vector<128x128xf32> -> vector<128x128xf32>
    %c0_10 = arith.constant 0 : index
    %c0_11 = arith.constant 0 : index
    %17 = vector.load %arg5[%c0_10, %c0_11] : memref<1x128xf32, #tpu.memory_space<vmem>>, vector<1x128xf32>
    %18 = vector.broadcast %17 : vector<1x128xf32> to vector<128x128xf32>
    %19 = arith.addf %16, %18 : vector<128x128xf32>
    %c0_12 = arith.constant 0 : index
    %c0_13 = arith.constant 0 : index
    %20 = vector.load %arg6[%c0_12, %c0_13] : memref<128x128xf32, #tpu.memory_space<vmem>>, vector<128x128xf32>
    tpu.vector_store %arg6[%c0_12, %c0_13], %19 {strides = array<i32>} : memref<128x128xf32, #tpu.memory_space<vmem>>, vector<128x128xf32>,
    return
  }
  func.func @transform_0(%arg0: i32) -> (i32, i32) {
    %c0_i32 = arith.constant 0 : i32
    %c0_i32_0 = arith.constant 0 : i32
    return %arg0, %c0_i32 : i32, i32
  }
  func.func @transform_1(%arg0: i32) -> (i32, i32) {
    %c0_i32 = arith.constant 0 : i32
    %c0_i32_0 = arith.constant 0 : i32
    %c0_i32_1 = arith.constant 0 : i32
    return %c0_i32, %c0_i32_0 : i32, i32
  }
  func.func @transform_2(%arg0: i32) -> (i32, i32) {
    %c0_i32 = arith.constant 0 : i32
    %c0_i32_0 = arith.constant 0 : i32
    %c0_i32_1 = arith.constant 0 : i32
    return %c0_i32, %c0_i32_0 : i32, i32
  }
  func.func @transform_3(%arg0: i32) -> (i32, i32) {
    %c0_i32 = arith.constant 0 : i32
    %c0_i32_0 = arith.constant 0 : i32
    %c0_i32_1 = arith.constant 0 : i32
    return %c0_i32, %c0_i32_0 : i32, i32
  }
  func.func @transform_4(%arg0: i32) -> (i32, i32) {
    %c0_i32 = arith.constant 0 : i32
    %c0_i32_0 = arith.constant 0 : i32
    %c0_i32_1 = arith.constant 0 : i32
    return %c0_i32, %c0_i32_0 : i32, i32
  }
  func.func @transform_5(%arg0: i32) -> (i32, i32) {
    %c0_i32 = arith.constant 0 : i32
    %c0_i32_0 = arith.constant 0 : i32
    return %arg0, %c0_i32 : i32, i32
  }
}

</mosaic_0001>

<llo_original>
// kernel: tpu_custom_call.1
$region0: #{tpu_custom_call.1}
  #allocation0 [shape = 'u32[]', space=smem, size = 0x4, offset = 0x4, fixed_abs, tag = 'smem constant byte address 0x4 - core index']
  #allocation1 [shape = 'u32[144,128]{1,0:T(1,128)}', space=vmem, size = 0x12000, scoped, tag = 'internal scratch']
  %s0 = inlined_call_operand.hbm [shape: f32[256,256], index: 0, kind: input, shape index: {}]
  %s1 = inlined_call_operand.hbm [shape: f32[256,128], index: 1, kind: input, shape index: {}]
  %s2 = inlined_call_operand.vmem [shape: f32[1,128], index: 2, kind: input, shape index: {}]
  %s3 = inlined_call_operand.hbm [shape: f32[128,128], index: 3, kind: input, shape index: {}]
  %s4 = inlined_call_operand.vmem [shape: f32[1,128], index: 4, kind: input, shape index: {}]
  %s5 = inlined_call_operand.hbm [shape: f32[256,128], index: 5, kind: output, shape index: {}]
  %s6 = sld [smem:[#allocation0]]
  $region65: #{tpu_custom_call.1} parent=0
    _
  %s8 = ssub.s32 1, %s6
  %s9 = scalar_select 0, %s8, %s6
  $region1: #{tpu_custom_call.1} parent=0
    #allocation2 [shape = 'u8[262144]{0}', space=vmem, size = 0x40000, scoped, tag = 'input window, operand 0']
    #allocation3 [shape = 's32[2]{0}', space=sflag, size = 0x8, scoped, tag = 'scoped memory for tpu_custom_call.1']
    #allocation4 [shape = 's32[2]{0}', space=sflag, size = 0x8, scoped, tag = 'scoped memory for tpu_custom_call.1']
    #allocation5 [shape = 'u8[131072]{0}', space=vmem, size = 0x20000, scoped, tag = 'input window, operand 1, single buffered']
    #allocation6 [shape = 's32[1]{0}', space=sflag, size = 0x4, scoped, tag = 'scoped memory for tpu_custom_call.1']
    #allocation7 [shape = 'u8[65536]{0}', space=vmem, size = 0x10000, scoped, tag = 'input window, operand 3, single buffered']
    #allocation8 [shape = 'u8[131072]{0}', space=vmem, size = 0x20000, scoped, tag = 'output window, operand 0']
    %10 = vsyncpa [#allocation3], 0
    %s11 = scalar_lea.sflag [#allocation3], 1
    %12 = vsyncpa %s11, 0
    %13 = vsyncpa [#allocation6], 0
    %14 = vsyncpa [#allocation4], 0
    %s15 = scalar_lea.sflag [#allocation4], 1
    %16 = vsyncpa %s15, 0
    loop: start=0, step=1, limit=4
    $region2: #{tpu_custom_call.1} parent=1 // loop_pre_header
      _
    $region3: #{tpu_custom_call.1} parent=1 // loop_header
      %s18 = sphi 0, %s22
      %p19 = scmp.ge.s32.totalorder %s18, 4
      %s28 = sphi 0, %s30
      %s31 = sphi 0, %s28
      %s32 = sphi 0, %s31
      %s48 = sphi 0, %s32
      %s52 = sphi 0, %s52
      %s54 = sphi 0, %s52
      %s55 = sphi 0, %s54
      %s69 = sphi 0, %s55
      %s73 = sphi 0, %s73
      %s75 = sphi 0, %s73
      %s76 = sphi 0, %s75
      %s90 = sphi 0, %s76
      %s94 = sphi 0, %s94
      %s96 = sphi 0, %s94
      %s97 = sphi 0, %s96
      %s111 = sphi 0, %s97
      %s115 = sphi 0, %s115
      %s117 = sphi 0, %s115
      %s118 = sphi 0, %s117
      %s132 = sphi 0, %s118
      %s138 = sphi 0, %s140
      %s141 = sphi 0, %s138
      %s142 = sphi 0, %s141
      %s158 = sphi 0, %s142
    $region4: #{tpu_custom_call.1} parent=1 // loop_header_branch
      %21 = sbr.rel (%p19) target = $region8
    $region5: #{tpu_custom_call.1} parent=1 // loop_body
      %s23 = ssub.s32 %s18, 1
      %s24 = ssub.s32 %s18, 2
      %s25 = sadd.s32 %s18, 1
      %s26 = ssub.s32 %s18, %s25
      %p27 = scmp.eq.s32.totalorder %s26, 0
      %s29 = sadd.s32 %s28, 1
      %s30 = scalar_select %p27, %s28, %s29
      %p33 = pneg %p27
      %p34 = scmp.eq.s32.totalorder %s18, 1
      %p35 = por %p33, %p34
      %p36 = scmp.ne.s32.totalorder %s28, %s31
      %p37 = scmp.eq.s32.totalorder %s18, 0
      %p38 = por %p36, %p37
      %p39 = scmp.ne.s32.totalorder %s28, %s31
      %p40 = scmp.eq.s32.totalorder %s23, 1
      %p41 = por %p39, %p40
      %p42 = scmp.ne.s32.totalorder %s31, %s32
      %p43 = scmp.eq.s32.totalorder %s23, 0
      %p44 = por %p42, %p43
      %p45 = scmp.ne.s32.totalorder %s31, %s32
      %p46 = scmp.eq.s32.totalorder %s24, 1
      %p47 = por %p45, %p46
      %p49 = scmp.ne.s32.totalorder %s32, %s48
      %p50 = scmp.eq.s32.totalorder %s24, 0
      %p51 = por %p49, %p50
      %s53 = sadd.s32 %s52, 1
      %p56 = scmp.eq.s32.totalorder %s18, 1
      %p57 = scmp.ne.s32.totalorder %s52, %s54
      %p58 = scmp.eq.s32.totalorder %s18, 0
      %p59 = por %p57, %p58
      %p60 = scmp.ne.s32.totalorder %s52, %s54
      %p61 = scmp.eq.s32.totalorder %s23, 1
      %p62 = por %p60, %p61
      %p63 = scmp.ne.s32.totalorder %s54, %s55
      %p64 = scmp.eq.s32.totalorder %s23, 0
      %p65 = por %p63, %p64
      %p66 = scmp.ne.s32.totalorder %s54, %s55
      %p67 = scmp.eq.s32.totalorder %s24, 1
      %p68 = por %p66, %p67
      %p70 = scmp.ne.s32.totalorder %s55, %s69
      %p71 = scmp.eq.s32.totalorder %s24, 0
      %p72 = por %p70, %p71
      %s74 = sadd.s32 %s73, 1
      %p77 = scmp.eq.s32.totalorder %s18, 1
      %p78 = scmp.ne.s32.totalorder %s73, %s75
      %p79 = scmp.eq.s32.totalorder %s18, 0
      %p80 = por %p78, %p79
      %p81 = scmp.ne.s32.totalorder %s73, %s75
      %p82 = scmp.eq.s32.totalorder %s23, 1
      %p83 = por %p81, %p82
      %p84 = scmp.ne.s32.totalorder %s75, %s76
      %p85 = scmp.eq.s32.totalorder %s23, 0
      %p86 = por %p84, %p85
      %p87 = scmp.ne.s32.totalorder %s75, %s76
      %p88 = scmp.eq.s32.totalorder %s24, 1
      %p89 = por %p87, %p88
      %p91 = scmp.ne.s32.totalorder %s76, %s90
      %p92 = scmp.eq.s32.totalorder %s24, 0
      %p93 = por %p91, %p92
      %s95 = sadd.s32 %s94, 1
      %p98 = scmp.eq.s32.totalorder %s18, 1
      %p99 = scmp.ne.s32.totalorder %s94, %s96
      %p100 = scmp.eq.s32.totalorder %s18, 0
      %p101 = por %p99, %p100
      %p102 = scmp.ne.s32.totalorder %s94, %s96
      %p103 = scmp.eq.s32.totalorder %s23, 1
      %p104 = por %p102, %p103
      %p105 = scmp.ne.s32.totalorder %s96, %s97
      %p106 = scmp.eq.s32.totalorder %s23, 0
      %p107 = por %p105, %p106
      %p108 = scmp.ne.s32.totalorder %s96, %s97
      %p109 = scmp.eq.s32.totalorder %s24, 1
      %p110 = por %p108, %p109
      %p112 = scmp.ne.s32.totalorder %s97, %s111
      %p113 = scmp.eq.s32.totalorder %s24, 0
      %p114 = por %p112, %p113
      %s116 = sadd.s32 %s115, 1
      %p119 = scmp.eq.s32.totalorder %s18, 1
      %p120 = scmp.ne.s32.totalorder %s115, %s117
      %p121 = scmp.eq.s32.totalorder %s18, 0
      %p122 = por %p120, %p121
      %p123 = scmp.ne.s32.totalorder %s115, %s117
      %p124 = scmp.eq.s32.totalorder %s23, 1
      %p125 = por %p123, %p124
      %p126 = scmp.ne.s32.totalorder %s117, %s118
      %p127 = scmp.eq.s32.totalorder %s23, 0
      %p128 = por %p126, %p127
      %p129 = scmp.ne.s32.totalorder %s117, %s118
      %p130 = scmp.eq.s32.totalorder %s24, 1
      %p131 = por %p129, %p130
      %p133 = scmp.ne.s32.totalorder %s118, %s132
      %p134 = scmp.eq.s32.totalorder %s24, 0
      %p135 = por %p133, %p134
      %s136 = ssub.s32 %s18, %s25
      %p137 = scmp.eq.s32.totalorder %s136, 0
      %s139 = sadd.s32 %s138, 1
      %s140 = scalar_select %p137, %s138, %s139
      %p143 = pneg %p137
      %p144 = scmp.eq.s32.totalorder %s18, 1
      %p145 = por %p143, %p144
      %p146 = scmp.ne.s32.totalorder %s138, %s141
      %p147 = scmp.eq.s32.totalorder %s18, 0
      %p148 = por %p146, %p147
      %p149 = scmp.ne.s32.totalorder %s138, %s141
      %p150 = scmp.eq.s32.totalorder %s23, 1
      %p151 = por %p149, %p150
      %p152 = scmp.ne.s32.totalorder %s141, %s142
      %p153 = scmp.eq.s32.totalorder %s23, 0
      %p154 = por %p152, %p153
      %p155 = scmp.ne.s32.totalorder %s141, %s142
      %p156 = scmp.eq.s32.totalorder %s24, 1
      %p157 = por %p155, %p156
      %p159 = scmp.ne.s32.totalorder %s142, %s158
      %p160 = scmp.eq.s32.totalorder %s24, 0
      %p161 = por %p159, %p160
      %p162 = scmp.le.s32.totalorder 1, %s18
      %p163 = scmp.lt.s32.totalorder %s18, 3
      %p164 = pnand %p162, %p163
      %p165 = pneg %p164
      // Predicated region
      $region9: #{tpu_custom_call.1} parent=5 // pred_check
        _
      $region10: #{tpu_custom_call.1} parent=5 // pred_check_branch
        %167 = sbr.rel (%p164) target = $region12
      $region11: #{tpu_custom_call.1} parent=5 // pred_region
        %s168 = ssub.s32 %s18, 1
        // Predicated region
        $region13: #{tpu_custom_call.1} parent=11 // pred_check
          %p169 = pneg %p65
        $region14: #{tpu_custom_call.1} parent=11 // pred_check_branch
          %171 = sbr.rel (%p169) target = $region16
        $region15: #{tpu_custom_call.1} parent=11 // pred_region
          %s173 = ssub.s32 4096, 4096
          %174 = vsyncadd [#allocation6], %s173
          %s175 = sshll.u32 [#allocation5], 4
          %s176 = int_to_ptr.vmem [resolvable:$true] %s175
          %181 = dma.hbm_to_vmem [thread:$0]  %s1, 4096, %s176, [#allocation6], 128, 128, 8
        $region16: #{tpu_custom_call.1} parent=11 // pred_fallthru
          _
        // Predicated region
        $region17: #{tpu_custom_call.1} parent=11 // pred_check
          %p182 = pneg %p86
        $region18: #{tpu_custom_call.1} parent=11 // pred_check_branch
          %184 = sbr.rel (%p182) target = $region20
        $region19: #{tpu_custom_call.1} parent=11 // pred_region
          _
        $region20: #{tpu_custom_call.1} parent=11 // pred_fallthru
          _
        // Predicated region
        $region21: #{tpu_custom_call.1} parent=11 // pred_check
          %p185 = pneg %p107
        $region22: #{tpu_custom_call.1} parent=11 // pred_check_branch
          %187 = sbr.rel (%p185) target = $region24
        $region23: #{tpu_custom_call.1} parent=11 // pred_region
          %s189 = ssub.s32 2048, 2048
          %190 = vsyncadd [#allocation6], %s189
          %s191 = sshll.u32 [#allocation7], 4
          %s192 = int_to_ptr.vmem [resolvable:$true] %s191
          %197 = dma.hbm_to_vmem [thread:$0]  %s3, 2048, %s192, [#allocation6], 128, 128, 8
        $region24: #{tpu_custom_call.1} parent=11 // pred_fallthru
          _
        // Predicated region
        $region25: #{tpu_custom_call.1} parent=11 // pred_check
          %p198 = pneg %p128
        $region26: #{tpu_custom_call.1} parent=11 // pred_check_branch
          %200 = sbr.rel (%p198) target = $region28
        $region27: #{tpu_custom_call.1} parent=11 // pred_region
          _
        $region28: #{tpu_custom_call.1} parent=11 // pred_fallthru
          _
      $region12: #{tpu_custom_call.1} parent=5 // pred_fallthru
        _
      %p201 = scmp.lt.s32.totalorder %s18, 2
      // Predicated region
      $region29: #{tpu_custom_call.1} parent=5 // pred_check
        %p202 = pneg %p201
      $region30: #{tpu_custom_call.1} parent=5 // pred_check_branch
        %204 = sbr.rel (%p202) target = $region32
      $region31: #{tpu_custom_call.1} parent=5 // pred_region
        // Predicated region
        $region33: #{tpu_custom_call.1} parent=31 // pred_check
          %p205 = pneg %p38
        $region34: #{tpu_custom_call.1} parent=31 // pred_check_branch
          %207 = sbr.rel (%p205) target = $region36
        $region35: #{tpu_custom_call.1} parent=31 // pred_region
          %s208 = sand.u32 %s28, 1
          %s209 = scalar_lea.sflag [#allocation3], %s208
          %s210 = sand.u32 %s28, 1
          %s211 = smul.addr %s210, 256
          %s212 = scalar_lea.vmem [#allocation2], %s211
          %s213 = smul.u32 16, %s18
          %s215 = ssub.s32 4096, 4096
          %216 = vsyncadd %s209, %s215
          %s217 = smul.addr %s213, 2
          %s218 = smul.addr %s217, 128
          %s219 = scalar_lea.hbm %s0, %s218
          %s220 = sshll.u32 %s212, 4
          %s221 = int_to_ptr.vmem [resolvable:$true] %s220
          %226 = dma.hbm_to_vmem [thread:$0]  %s219, 4096, %s221, %s209, 256, 256, 16
        $region36: #{tpu_custom_call.1} parent=31 // pred_fallthru
          _
      $region32: #{tpu_custom_call.1} parent=5 // pred_fallthru
        _
      %p227 = scmp.le.s32.totalorder 1, %s18
      %p228 = scmp.lt.s32.totalorder %s18, 3
      %p229 = pnand %p227, %p228
      %p230 = pneg %p229
      // Predicated region
      $region37: #{tpu_custom_call.1} parent=5 // pred_check
        _
      $region38: #{tpu_custom_call.1} parent=5 // pred_check_branch
        %232 = sbr.rel (%p229) target = $region40
      $region39: #{tpu_custom_call.1} parent=5 // pred_region
        %s233 = ssub.s32 %s18, 1
        %s234 = sand.u32 %s31, 1
        %s235 = scalar_lea.sflag [#allocation3], %s234
        %s236 = sand.u32 %s31, 1
        %s237 = smul.addr %s236, 256
        %s238 = scalar_lea.vmem [#allocation2], %s237
        // Predicated region
        $region41: #{tpu_custom_call.1} parent=39 // pred_check
          %p239 = pneg %p44
        $region42: #{tpu_custom_call.1} parent=39 // pred_check_branch
          %241 = sbr.rel (%p239) target = $region44
        $region43: #{tpu_custom_call.1} parent=39 // pred_region
          %242 = dma.done %s235, 4096
        $region44: #{tpu_custom_call.1} parent=39 // pred_fallthru
          _
        // Predicated region
        $region45: #{tpu_custom_call.1} parent=39 // pred_check
          %p243 = pneg %p65
        $region46: #{tpu_custom_call.1} parent=39 // pred_check_branch
          %245 = sbr.rel (%p243) target = $region48
        $region47: #{tpu_custom_call.1} parent=39 // pred_region
          %246 = dma.done [#allocation6], 4096
        $region48: #{tpu_custom_call.1} parent=39 // pred_fallthru
          _
        // Predicated region
        $region49: #{tpu_custom_call.1} parent=39 // pred_check
          %p247 = pneg %p107
        $region50: #{tpu_custom_call.1} parent=39 // pred_check_branch
          %249 = sbr.rel (%p247) target = $region52
        $region51: #{tpu_custom_call.1} parent=39 // pred_region
          %250 = dma.done [#allocation6], 2048
        $region52: #{tpu_custom_call.1} parent=39 // pred_fallthru
          _
        %s251 = sand.u32 %s31, 1
        %s252 = scalar_lea.sflag [#allocation3], %s251
        %s253 = sand.u32 %s31, 1
        %s254 = smul.addr %s253, 256
        %s255 = scalar_lea.vmem [#allocation2], %s254
        %p256 = pneg %p44
        %p257 = pneg %p41
        %p258 = pneg %p65
        %p259 = pneg %p62
        %p260 = pneg %p86
        %p261 = pneg %p83
        %p262 = pneg %p107
        %p263 = pneg %p104
        %p264 = pneg %p128
        %p265 = pneg %p125
        %p266 = pneg %p154
        %p267 = pneg %p151
        %s268 = sand.u32 %s141, 1
        %s269 = scalar_lea.sflag [#allocation4], %s268
        %s270 = sand.u32 %s141, 1
        %s271 = smul.addr %s270, 128
        %s272 = scalar_lea.vmem [#allocation8], %s271
        %s273 = smul.u32 16, %s23
        %s274 = smul.u32 16, %s23
        %v275 = vld [vmem:[%s238] sm:$0xff]
        %v276 = vld [vmem:[%s238 + $0x8] sm:$0xff]
        %v277 = vld [vmem:[%s238 + $0x10] sm:$0xff]
        %v278 = vld [vmem:[%s238 + $0x18] sm:$0xff]
        %v279 = vld [vmem:[%s238 + $0x20] sm:$0xff]
        %v280 = vld [vmem:[%s238 + $0x28] sm:$0xff]
        %v281 = vld [vmem:[%s238 + $0x30] sm:$0xff]
        %v282 = vld [vmem:[%s238 + $0x38] sm:$0xff]
        %v283 = vld [vmem:[%s238 + $0x40] sm:$0xff]
        %v284 = vld [vmem:[%s238 + $0x48] sm:$0xff]
        %v285 = vld [vmem:[%s238 + $0x50] sm:$0xff]
        %v286 = vld [vmem:[%s238 + $0x58] sm:$0xff]
        %v287 = vld [vmem:[%s238 + $0x60] sm:$0xff]
        %v288 = vld [vmem:[%s238 + $0x68] sm:$0xff]
        %v289 = vld [vmem:[%s238 + $0x70] sm:$0xff]
        %v290 = vld [vmem:[%s238 + $0x78] sm:$0xff]
        %v291 = vld [vmem:[%s238 + $0x80] sm:$0xff]
        %v292 = vld [vmem:[%s238 + $0x88] sm:$0xff]
        %v293 = vld [vmem:[%s238 + $0x90] sm:$0xff]
        %v294 = vld [vmem:[%s238 + $0x98] sm:$0xff]
        %v295 = vld [vmem:[%s238 + $0xa0] sm:$0xff]
        %v296 = vld [vmem:[%s238 + $0xa8] sm:$0xff]
        %v297 = vld [vmem:[%s238 + $0xb0] sm:$0xff]
        %v298 = vld [vmem:[%s238 + $0xb8] sm:$0xff]
        %v299 = vld [vmem:[%s238 + $0xc0] sm:$0xff]
        %v300 = vld [vmem:[%s238 + $0xc8] sm:$0xff]
        %v301 = vld [vmem:[%s238 + $0xd0] sm:$0xff]
        %v302 = vld [vmem:[%s238 + $0xd8] sm:$0xff]
        %v303 = vld [vmem:[%s238 + $0xe0] sm:$0xff]
        %v304 = vld [vmem:[%s238 + $0xe8] sm:$0xff]
        %v305 = vld [vmem:[%s238 + $0xf0] sm:$0xff]
        %v306 = vld [vmem:[%s238 + $0xf8] sm:$0xff]
        %v307 = vld [vmem:[#allocation5] sm:$0xff]
        %v308 = vld [vmem:[#allocation5 + $0x8] sm:$0xff]
        %v309 = vld [vmem:[#allocation5 + $0x10] sm:$0xff]
        %v310 = vld [vmem:[#allocation5 + $0x18] sm:$0xff]
        %v311 = vld [vmem:[#allocation5 + $0x20] sm:$0xff]
        %v312 = vld [vmem:[#allocation5 + $0x28] sm:$0xff]
        %v313 = vld [vmem:[#allocation5 + $0x30] sm:$0xff]
        %v314 = vld [vmem:[#allocation5 + $0x38] sm:$0xff]
        %v315 = vld [vmem:[#allocation5 + $0x40] sm:$0xff]
        %v316 = vld [vmem:[#allocation5 + $0x48] sm:$0xff]
        %v317 = vld [vmem:[#allocation5 + $0x50] sm:$0xff]
        %v318 = vld [vmem:[#allocation5 + $0x58] sm:$0xff]
        %v319 = vld [vmem:[#allocation5 + $0x60] sm:$0xff]
        %v320 = vld [vmem:[#allocation5 + $0x68] sm:$0xff]
        %v321 = vld [vmem:[#allocation5 + $0x70] sm:$0xff]
        %v322 = vld [vmem:[#allocation5 + $0x78] sm:$0xff]
        %v323 = vld [vmem:[#allocation5 + $0x80] sm:$0xff]
        %v324 = vld [vmem:[#allocation5 + $0x88] sm:$0xff]
        %v325 = vld [vmem:[#allocation5 + $0x90] sm:$0xff]
        %v326 = vld [vmem:[#allocation5 + $0x98] sm:$0xff]
        %v327 = vld [vmem:[#allocation5 + $0xa0] sm:$0xff]
        %v328 = vld [vmem:[#allocation5 + $0xa8] sm:$0xff]
        %v329 = vld [vmem:[#allocation5 + $0xb0] sm:$0xff]
        %v330 = vld [vmem:[#allocation5 + $0xb8] sm:$0xff]
        %v331 = vld [vmem:[#allocation5 + $0xc0] sm:$0xff]
        %v332 = vld [vmem:[#allocation5 + $0xc8] sm:$0xff]
        %v333 = vld [vmem:[#allocation5 + $0xd0] sm:$0xff]
        %v334 = vld [vmem:[#allocation5 + $0xd8] sm:$0xff]
        %v335 = vld [vmem:[#allocation5 + $0xe0] sm:$0xff]
        %v336 = vld [vmem:[#allocation5 + $0xe8] sm:$0xff]
        %v337 = vld [vmem:[#allocation5 + $0xf0] sm:$0xff]
        %v338 = vld [vmem:[#allocation5 + $0xf8] sm:$0xff]
        %v339 = vld [vmem:[%s2] sm:$0x1]
        %v341 = vlaneseq
        %v342 = vshrl.u32 %v341, 7
        %v343 = vsub.s32 0, %v342
        %v344 = vrot.slane %v339, %v343
        %346 = vmatprep.subr.mxu0 0.0
        %347 = vmatpush1.msra.mxu0 %v307
        %348 = vmatprep.subr.mxu0 0.0
        %349 = vmatpush1.msra.mxu0 %v308
        %350 = vmatprep.subr.mxu0 0.0
        %351 = vmatpush1.msra.mxu0 %v309
        %352 = vmatprep.subr.mxu0 0.0
        %353 = vmatpush1.msra.mxu0 %v310
        %354 = vmatprep.subr.mxu0 0.0
        %355 = vmatpush1.msra.mxu0 %v311
        %356 = vmatprep.subr.mxu0 0.0
        %357 = vmatpush1.msra.mxu0 %v312
        %358 = vmatprep.subr.mxu0 0.0
        %359 = vmatpush1.msra.mxu0 %v313
        %360 = vmatprep.subr.mxu0 0.0
        %361 = vmatpush1.msra.mxu0 %v314
        %362 = vmatprep.subr.mxu0 0.0
        %363 = vmatpush1.msra.mxu0 %v315
        %364 = vmatprep.subr.mxu0 0.0
        %365 = vmatpush1.msra.mxu0 %v316
        %366 = vmatprep.subr.mxu0 0.0
        %367 = vmatpush1.msra.mxu0 %v317
        %368 = vmatprep.subr.mxu0 0.0
        %369 = vmatpush1.msra.mxu0 %v318
        %370 = vmatprep.subr.mxu0 0.0
        %371 = vmatpush1.msra.mxu0 %v319
        %372 = vmatprep.subr.mxu0 0.0
        %373 = vmatpush1.msra.mxu0 %v320
        %374 = vmatprep.subr.mxu0 0.0
        %375 = vmatpush1.msra.mxu0 %v321
        %376 = vmatprep.subr.mxu0 0.0
        %377 = vmatpush1.msra.mxu0 %v322
        %378 = vmatprep.subr.mxu0 0.0
        %379 = vmatpush1.msra.mxu0 %v323
        %380 = vmatprep.subr.mxu0 0.0
        %381 = vmatpush1.msra.mxu0 %v324
        %382 = vmatprep.subr.mxu0 0.0
        %383 = vmatpush1.msra.mxu0 %v325
        %384 = vmatprep.subr.mxu0 0.0
        %385 = vmatpush1.msra.mxu0 %v326
        %386 = vmatprep.subr.mxu0 0.0
        %387 = vmatpush1.msra.mxu0 %v327
        %388 = vmatprep.subr.mxu0 0.0
        %389 = vmatpush1.msra.mxu0 %v328
        %390 = vmatprep.subr.mxu0 0.0
        %391 = vmatpush1.msra.mxu0 %v329
        %392 = vmatprep.subr.mxu0 0.0
        %393 = vmatpush1.msra.mxu0 %v330
        %394 = vmatprep.subr.mxu0 0.0
        %395 = vmatpush1.msra.mxu0 %v331
        %396 = vmatprep.subr.mxu0 0.0
        %397 = vmatpush1.msra.mxu0 %v332
        %398 = vmatprep.subr.mxu0 0.0
        %399 = vmatpush1.msra.mxu0 %v333
        %400 = vmatprep.subr.mxu0 0.0
        %401 = vmatpush1.msra.mxu0 %v334
        %402 = vmatprep.subr.mxu0 0.0
        %403 = vmatpush1.msra.mxu0 %v335
        %404 = vmatprep.subr.mxu0 0.0
        %405 = vmatpush1.msra.mxu0 %v336
        %406 = vmatprep.subr.mxu0 0.0
        %407 = vmatpush1.msra.mxu0 %v337
        %408 = vmatprep.subr.mxu0 0.0
        %409 = vmatpush1.msra.mxu0 %v338
        %410 = vmatprep.mubr.f32.mxu0 %v276
        %411 = vmatmul.mubr.f32.gmra.mrb[0].mxu0 %v275
        %v412 = vpop.f32.mrb[0].mxu0
        %v413 = vadd.f32 %v344, %v412
        %v414 = vpop.f32.mrb[0].mxu0
        %415 = vmatprep.mubr.f32.mxu0 %v278
        %416 = vmatmul.mubr.f32.gmra.mrb[0].mxu0 %v277
        %v417 = vpop.f32.mrb[0].mxu0
        %v418 = vadd.f32 %v344, %v417
        %v419 = vpop.f32.mrb[0].mxu0
        %420 = vmatprep.mubr.f32.mxu0 %v280
        %421 = vmatmul.mubr.f32.gmra.mrb[0].mxu0 %v279
        %v422 = vpop.f32.mrb[0].mxu0
        %v423 = vadd.f32 %v344, %v422
        %v424 = vpop.f32.mrb[0].mxu0
        %425 = vmatprep.mubr.f32.mxu0 %v282
        %426 = vmatmul.mubr.f32.gmra.mrb[0].mxu0 %v281
        %v427 = vpop.f32.mrb[0].mxu0
        %v428 = vadd.f32 %v344, %v427
        %v429 = vpop.f32.mrb[0].mxu0
        %430 = vmatprep.mubr.f32.mxu0 %v284
        %431 = vmatmul.mubr.f32.gmra.mrb[0].mxu0 %v283
        %v432 = vpop.f32.mrb[0].mxu0
        %v433 = vadd.f32 %v344, %v432
        %v434 = vpop.f32.mrb[0].mxu0
        %435 = vmatprep.mubr.f32.mxu0 %v286
        %436 = vmatmul.mubr.f32.gmra.mrb[0].mxu0 %v285
        %v437 = vpop.f32.mrb[0].mxu0
        %v438 = vadd.f32 %v344, %v437
        %v439 = vpop.f32.mrb[0].mxu0
        %440 = vmatprep.mubr.f32.mxu0 %v288
        %441 = vmatmul.mubr.f32.gmra.mrb[0].mxu0 %v287
        %v442 = vpop.f32.mrb[0].mxu0
        %v443 = vadd.f32 %v344, %v442
        %v444 = vpop.f32.mrb[0].mxu0
        %445 = vmatprep.mubr.f32.mxu0 %v290
        %446 = vmatmul.mubr.f32.gmra.mrb[0].mxu0 %v289
        %v447 = vpop.f32.mrb[0].mxu0
        %v448 = vadd.f32 %v344, %v447
        %v449 = vpop.f32.mrb[0].mxu0
        %450 = vmatprep.mubr.f32.mxu0 %v292
        %451 = vmatmul.mubr.f32.gmra.mrb[0].mxu0 %v291
        %v452 = vpop.f32.mrb[0].mxu0
        %v453 = vadd.f32 %v344, %v452
        %v454 = vpop.f32.mrb[0].mxu0
        %455 = vmatprep.mubr.f32.mxu0 %v294
        %456 = vmatmul.mubr.f32.gmra.mrb[0].mxu0 %v293
        %v457 = vpop.f32.mrb[0].mxu0
        %v458 = vadd.f32 %v344, %v457
        %v459 = vpop.f32.mrb[0].mxu0
        %460 = vmatprep.mubr.f32.mxu0 %v296
        %461 = vmatmul.mubr.f32.gmra.mrb[0].mxu0 %v295
        %v462 = vpop.f32.mrb[0].mxu0
        %v463 = vadd.f32 %v344, %v462
        %v464 = vpop.f32.mrb[0].mxu0
        %465 = vmatprep.mubr.f32.mxu0 %v298
        %466 = vmatmul.mubr.f32.gmra.mrb[0].mxu0 %v297
        %v467 = vpop.f32.mrb[0].mxu0
        %v468 = vadd.f32 %v344, %v467
        %v469 = vpop.f32.mrb[0].mxu0
        %470 = vmatprep.mubr.f32.mxu0 %v300
        %471 = vmatmul.mubr.f32.gmra.mrb[0].mxu0 %v299
        %v472 = vpop.f32.mrb[0].mxu0
        %v473 = vadd.f32 %v344, %v472
        %v474 = vpop.f32.mrb[0].mxu0
        %475 = vmatprep.mubr.f32.mxu0 %v302
        %476 = vmatmul.mubr.f32.gmra.mrb[0].mxu0 %v301
        %v477 = vpop.f32.mrb[0].mxu0
        %v478 = vadd.f32 %v344, %v477
        %v479 = vpop.f32.mrb[0].mxu0
        %480 = vmatprep.mubr.f32.mxu0 %v304
        %481 = vmatmul.mubr.f32.gmra.mrb[0].mxu0 %v303
        %v482 = vpop.f32.mrb[0].mxu0
        %v483 = vadd.f32 %v344, %v482
        %v484 = vpop.f32.mrb[0].mxu0
        %485 = vmatprep.mubr.f32.mxu0 %v306
        %486 = vmatmul.mubr.f32.gmra.mrb[0].mxu0 %v305
        %v487 = vpop.f32.mrb[0].mxu0
        %v488 = vadd.f32 %v344, %v487
        %v489 = vpop.f32.mrb[0].mxu0
        %490 = vdwg.mxu0
        %491 = vmax.xlane.f32.xlu0 %v413
        %v492 = vpop.xlane.xlu0 %491
        %493 = vmax.xlane.f32.xlu0 %v418
        %v494 = vpop.xlane.xlu0 %493
        %495 = vmax.xlane.f32.xlu0 %v423
        %v496 = vpop.xlane.xlu0 %495
        %497 = vmax.xlane.f32.xlu0 %v428
        %v498 = vpop.xlane.xlu0 %497
        %499 = vmax.xlane.f32.xlu0 %v433
        %v500 = vpop.xlane.xlu0 %499
        %501 = vmax.xlane.f32.xlu0 %v438
        %v502 = vpop.xlane.xlu0 %501
        %503 = vmax.xlane.f32.xlu0 %v443
        %v504 = vpop.xlane.xlu0 %503
        %505 = vmax.xlane.f32.xlu0 %v448
        %v506 = vpop.xlane.xlu0 %505
        %507 = vmax.xlane.f32.xlu0 %v453
        %v508 = vpop.xlane.xlu0 %507
        %509 = vmax.xlane.f32.xlu0 %v458
        %v510 = vpop.xlane.xlu0 %509
        %511 = vmax.xlane.f32.xlu0 %v463
        %v512 = vpop.xlane.xlu0 %511
        %513 = vmax.xlane.f32.xlu0 %v468
        %v514 = vpop.xlane.xlu0 %513
        %515 = vmax.xlane.f32.xlu0 %v473
        %v516 = vpop.xlane.xlu0 %515
        %517 = vmax.xlane.f32.xlu0 %v478
        %v518 = vpop.xlane.xlu0 %517
        %519 = vmax.xlane.f32.xlu0 %v483
        %v520 = vpop.xlane.xlu0 %519
        %521 = vmax.xlane.f32.xlu0 %v488
        %v522 = vpop.xlane.xlu0 %521
        %v523 = vsub.f32 %v413, %v492
        %v524 = vsub.f32 %v418, %v494
        %v525 = vsub.f32 %v423, %v496
        %v526 = vsub.f32 %v428, %v498
        %v527 = vsub.f32 %v433, %v500
        %v528 = vsub.f32 %v438, %v502
        %v529 = vsub.f32 %v443, %v504
        %v530 = vsub.f32 %v448, %v506
        %v531 = vsub.f32 %v453, %v508
        %v532 = vsub.f32 %v458, %v510
        %v533 = vsub.f32 %v463, %v512
        %v534 = vsub.f32 %v468, %v514
        %v535 = vsub.f32 %v473, %v516
        %v536 = vsub.f32 %v478, %v518
        %v537 = vsub.f32 %v483, %v520
        %v538 = vsub.f32 %v488, %v522
        %v539 = vmul.f32 %v523, 1.442695
        %v540 = vpow.pop %v539
        %v541 = vmul.f32 %v524, 1.442695
        %v542 = vpow.pop %v541
        %v543 = vmul.f32 %v525, 1.442695
        %v544 = vpow.pop %v543
        %v545 = vmul.f32 %v526, 1.442695
        %v546 = vpow.pop %v545
        %v547 = vmul.f32 %v527, 1.442695
        %v548 = vpow.pop %v547
        %v549 = vmul.f32 %v528, 1.442695
        %v550 = vpow.pop %v549
        %v551 = vmul.f32 %v529, 1.442695
        %v552 = vpow.pop %v551
        %v553 = vmul.f32 %v530, 1.442695
        %v554 = vpow.pop %v553
        %v555 = vmul.f32 %v531, 1.442695
        %v556 = vpow.pop %v555
        %v557 = vmul.f32 %v532, 1.442695
        %v558 = vpow.pop %v557
        %v559 = vmul.f32 %v533, 1.442695
        %v560 = vpow.pop %v559
        %v561 = vmul.f32 %v534, 1.442695
        %v562 = vpow.pop %v561
        %v563 = vmul.f32 %v535, 1.442695
        %v564 = vpow.pop %v563
        %v565 = vmul.f32 %v536, 1.442695
        %v566 = vpow.pop %v565
        %v567 = vmul.f32 %v537, 1.442695
        %v568 = vpow.pop %v567
        %v569 = vmul.f32 %v538, 1.442695
        %v570 = vpow.pop %v569
        %571 = vadd.xlane.f32.xlu0 %v540
        %v572 = vpop.xlane.xlu0 %571
        %573 = vadd.xlane.f32.xlu0 %v542
        %v574 = vpop.xlane.xlu0 %573
        %575 = vadd.xlane.f32.xlu0 %v544
        %v576 = vpop.xlane.xlu0 %575
        %577 = vadd.xlane.f32.xlu0 %v546
        %v578 = vpop.xlane.xlu0 %577
        %579 = vadd.xlane.f32.xlu0 %v548
        %v580 = vpop.xlane.xlu0 %579
        %581 = vadd.xlane.f32.xlu0 %v550
        %v582 = vpop.xlane.xlu0 %581
        %583 = vadd.xlane.f32.xlu0 %v552
        %v584 = vpop.xlane.xlu0 %583
        %585 = vadd.xlane.f32.xlu0 %v554
        %v586 = vpop.xlane.xlu0 %585
        %587 = vadd.xlane.f32.xlu0 %v556
        %v588 = vpop.xlane.xlu0 %587
        %589 = vadd.xlane.f32.xlu0 %v558
        %v590 = vpop.xlane.xlu0 %589
        %591 = vadd.xlane.f32.xlu0 %v560
        %v592 = vpop.xlane.xlu0 %591
        %593 = vadd.xlane.f32.xlu0 %v562
        %v594 = vpop.xlane.xlu0 %593
        %595 = vadd.xlane.f32.xlu0 %v564
        %v596 = vpop.xlane.xlu0 %595
        %597 = vadd.xlane.f32.xlu0 %v566
        %v598 = vpop.xlane.xlu0 %597
        %599 = vadd.xlane.f32.xlu0 %v568
        %v600 = vpop.xlane.xlu0 %599
        %601 = vadd.xlane.f32.xlu0 %v570
        %v602 = vpop.xlane.xlu0 %601
        %v603 = vrcp.pop %v572
        %v604 = vmul.f32 %v540, %v603
        %v605 = vrcp.pop %v574
        %v606 = vmul.f32 %v542, %v605
        %v607 = vrcp.pop %v576
        %v608 = vmul.f32 %v544, %v607
        %v609 = vrcp.pop %v578
        %v610 = vmul.f32 %v546, %v609
        %v611 = vrcp.pop %v580
        %v612 = vmul.f32 %v548, %v611
        %v613 = vrcp.pop %v582
        %v614 = vmul.f32 %v550, %v613
        %v615 = vrcp.pop %v584
        %v616 = vmul.f32 %v552, %v615
        %v617 = vrcp.pop %v586
        %v618 = vmul.f32 %v554, %v617
        %v619 = vrcp.pop %v588
        %v620 = vmul.f32 %v556, %v619
        %v621 = vrcp.pop %v590
        %v622 = vmul.f32 %v558, %v621
        %v623 = vrcp.pop %v592
        %v624 = vmul.f32 %v560, %v623
        %v625 = vrcp.pop %v594
        %v626 = vmul.f32 %v562, %v625
        %v627 = vrcp.pop %v596
        %v628 = vmul.f32 %v564, %v627
        %v629 = vrcp.pop %v598
        %v630 = vmul.f32 %v566, %v629
        %v631 = vrcp.pop %v600
        %v632 = vmul.f32 %v568, %v631
        %v633 = vrcp.pop %v602
        %v634 = vmul.f32 %v570, %v633
        %v635 = vld [vmem:[#allocation7] sm:$0xff]
        %v636 = vld [vmem:[#allocation7 + $0x8] sm:$0xff]
        %v637 = vld [vmem:[#allocation7 + $0x10] sm:$0xff]
        %v638 = vld [vmem:[#allocation7 + $0x18] sm:$0xff]
        %v639 = vld [vmem:[#allocation7 + $0x20] sm:$0xff]
        %v640 = vld [vmem:[#allocation7 + $0x28] sm:$0xff]
        %v641 = vld [vmem:[#allocation7 + $0x30] sm:$0xff]
        %v642 = vld [vmem:[#allocation7 + $0x38] sm:$0xff]
        %v643 = vld [vmem:[#allocation7 + $0x40] sm:$0xff]
        %v644 = vld [vmem:[#allocation7 + $0x48] sm:$0xff]
        %v645 = vld [vmem:[#allocation7 + $0x50] sm:$0xff]
        %v646 = vld [vmem:[#allocation7 + $0x58] sm:$0xff]
        %v647 = vld [vmem:[#allocation7 + $0x60] sm:$0xff]
        %v648 = vld [vmem:[#allocation7 + $0x68] sm:$0xff]
        %v649 = vld [vmem:[#allocation7 + $0x70] sm:$0xff]
        %v650 = vld [vmem:[#allocation7 + $0x78] sm:$0xff]
        %v651 = vld [vmem:[%s4] sm:$0x1]
        %v653 = vlaneseq
        %v654 = vshrl.u32 %v653, 7
        %v655 = vsub.s32 0, %v654
        %v656 = vrot.slane %v651, %v655
        %658 = vmatprep.subr.mxu0 0.0
        %659 = vmatpush1.msra.mxu0 %v635
        %660 = vmatprep.subr.mxu0 0.0
        %661 = vmatpush1.msra.mxu0 %v636
        %662 = vmatprep.subr.mxu0 0.0
        %663 = vmatpush1.msra.mxu0 %v637
        %664 = vmatprep.subr.mxu0 0.0
        %665 = vmatpush1.msra.mxu0 %v638
        %666 = vmatprep.subr.mxu0 0.0
        %667 = vmatpush1.msra.mxu0 %v639
        %668 = vmatprep.subr.mxu0 0.0
        %669 = vmatpush1.msra.mxu0 %v640
        %670 = vmatprep.subr.mxu0 0.0
        %671 = vmatpush1.msra.mxu0 %v641
        %672 = vmatprep.subr.mxu0 0.0
        %673 = vmatpush1.msra.mxu0 %v642
        %674 = vmatprep.subr.mxu0 0.0
        %675 = vmatpush1.msra.mxu0 %v643
        %676 = vmatprep.subr.mxu0 0.0
        %677 = vmatpush1.msra.mxu0 %v644
        %678 = vmatprep.subr.mxu0 0.0
        %679 = vmatpush1.msra.mxu0 %v645
        %680 = vmatprep.subr.mxu0 0.0
        %681 = vmatpush1.msra.mxu0 %v646
        %682 = vmatprep.subr.mxu0 0.0
        %683 = vmatpush1.msra.mxu0 %v647
        %684 = vmatprep.subr.mxu0 0.0
        %685 = vmatpush1.msra.mxu0 %v648
        %686 = vmatprep.subr.mxu0 0.0
        %687 = vmatpush1.msra.mxu0 %v649
        %688 = vmatprep.subr.mxu0 0.0
        %689 = vmatpush1.msra.mxu0 %v650
        %690 = vmatprep.subr.mxu0 0.0
        %691 = vmatpush1.msra.mxu0 0.0
        %692 = vmatprep.subr.mxu0 0.0
        %693 = vmatpush1.msra.mxu0 0.0
        %694 = vmatprep.subr.mxu0 0.0
        %695 = vmatpush1.msra.mxu0 0.0
        %696 = vmatprep.subr.mxu0 0.0
        %697 = vmatpush1.msra.mxu0 0.0
        %698 = vmatprep.subr.mxu0 0.0
        %699 = vmatpush1.msra.mxu0 0.0
        %700 = vmatprep.subr.mxu0 0.0
        %701 = vmatpush1.msra.mxu0 0.0
        %702 = vmatprep.subr.mxu0 0.0
        %703 = vmatpush1.msra.mxu0 0.0
        %704 = vmatprep.subr.mxu0 0.0
        %705 = vmatpush1.msra.mxu0 0.0
        %706 = vmatprep.subr.mxu0 0.0
        %707 = vmatpush1.msra.mxu0 0.0
        %708 = vmatprep.subr.mxu0 0.0
        %709 = vmatpush1.msra.mxu0 0.0
        %710 = vmatprep.subr.mxu0 0.0
        %711 = vmatpush1.msra.mxu0 0.0
        %712 = vmatprep.subr.mxu0 0.0
        %713 = vmatpush1.msra.mxu0 0.0
        %714 = vmatprep.subr.mxu0 0.0
        %715 = vmatpush1.msra.mxu0 0.0
        %716 = vmatprep.subr.mxu0 0.0
        %717 = vmatpush1.msra.mxu0 0.0
        %718 = vmatprep.subr.mxu0 0.0
        %719 = vmatpush1.msra.mxu0 0.0
        %720 = vmatprep.subr.mxu0 0.0
        %721 = vmatpush1.msra.mxu0 0.0
        %722 = vmatprep.mubr.f32.mxu0 0.0
        %723 = vmatmul.mubr.f32.gmra.mrb[0].mxu0 %v604
        %v724 = vpop.f32.mrb[0].mxu0
        %v725 = vadd.f32 %v656, %v724
        %v726 = vpop.f32.mrb[0].mxu0
        %727 = vmatprep.mubr.f32.mxu0 0.0
        %728 = vmatmul.mubr.f32.gmra.mrb[0].mxu0 %v606
        %v729 = vpop.f32.mrb[0].mxu0
        %v730 = vadd.f32 %v656, %v729
        %v731 = vpop.f32.mrb[0].mxu0
        %732 = vmatprep.mubr.f32.mxu0 0.0
        %733 = vmatmul.mubr.f32.gmra.mrb[0].mxu0 %v608
        %v734 = vpop.f32.mrb[0].mxu0
        %v735 = vadd.f32 %v656, %v734
        %v736 = vpop.f32.mrb[0].mxu0
        %737 = vmatprep.mubr.f32.mxu0 0.0
        %738 = vmatmul.mubr.f32.gmra.mrb[0].mxu0 %v610
        %v739 = vpop.f32.mrb[0].mxu0
        %v740 = vadd.f32 %v656, %v739
        %v741 = vpop.f32.mrb[0].mxu0
        %742 = vmatprep.mubr.f32.mxu0 0.0
        %743 = vmatmul.mubr.f32.gmra.mrb[0].mxu0 %v612
        %v744 = vpop.f32.mrb[0].mxu0
        %v745 = vadd.f32 %v656, %v744
        %v746 = vpop.f32.mrb[0].mxu0
        %747 = vmatprep.mubr.f32.mxu0 0.0
        %748 = vmatmul.mubr.f32.gmra.mrb[0].mxu0 %v614
        %v749 = vpop.f32.mrb[0].mxu0
        %v750 = vadd.f32 %v656, %v749
        %v751 = vpop.f32.mrb[0].mxu0
        %752 = vmatprep.mubr.f32.mxu0 0.0
        %753 = vmatmul.mubr.f32.gmra.mrb[0].mxu0 %v616
        %v754 = vpop.f32.mrb[0].mxu0
        %v755 = vadd.f32 %v656, %v754
        %v756 = vpop.f32.mrb[0].mxu0
        %757 = vmatprep.mubr.f32.mxu0 0.0
        %758 = vmatmul.mubr.f32.gmra.mrb[0].mxu0 %v618
        %v759 = vpop.f32.mrb[0].mxu0
        %v760 = vadd.f32 %v656, %v759
        %v761 = vpop.f32.mrb[0].mxu0
        %762 = vmatprep.mubr.f32.mxu0 0.0
        %763 = vmatmul.mubr.f32.gmra.mrb[0].mxu0 %v620
        %v764 = vpop.f32.mrb[0].mxu0
        %v765 = vadd.f32 %v656, %v764
        %v766 = vpop.f32.mrb[0].mxu0
        %767 = vmatprep.mubr.f32.mxu0 0.0
        %768 = vmatmul.mubr.f32.gmra.mrb[0].mxu0 %v622
        %v769 = vpop.f32.mrb[0].mxu0
        %v770 = vadd.f32 %v656, %v769
        %v771 = vpop.f32.mrb[0].mxu0
        %772 = vmatprep.mubr.f32.mxu0 0.0
        %773 = vmatmul.mubr.f32.gmra.mrb[0].mxu0 %v624
        %v774 = vpop.f32.mrb[0].mxu0
        %v775 = vadd.f32 %v656, %v774
        %v776 = vpop.f32.mrb[0].mxu0
        %777 = vmatprep.mubr.f32.mxu0 0.0
        %778 = vmatmul.mubr.f32.gmra.mrb[0].mxu0 %v626
        %v779 = vpop.f32.mrb[0].mxu0
        %v780 = vadd.f32 %v656, %v779
        %v781 = vpop.f32.mrb[0].mxu0
        %782 = vmatprep.mubr.f32.mxu0 0.0
        %783 = vmatmul.mubr.f32.gmra.mrb[0].mxu0 %v628
        %v784 = vpop.f32.mrb[0].mxu0
        %v785 = vadd.f32 %v656, %v784
        %v786 = vpop.f32.mrb[0].mxu0
        %787 = vmatprep.mubr.f32.mxu0 0.0
        %788 = vmatmul.mubr.f32.gmra.mrb[0].mxu0 %v630
        %v789 = vpop.f32.mrb[0].mxu0
        %v790 = vadd.f32 %v656, %v789
        %v791 = vpop.f32.mrb[0].mxu0
        %792 = vmatprep.mubr.f32.mxu0 0.0
        %793 = vmatmul.mubr.f32.gmra.mrb[0].mxu0 %v632
        %v794 = vpop.f32.mrb[0].mxu0
        %v795 = vadd.f32 %v656, %v794
        %v796 = vpop.f32.mrb[0].mxu0
        %797 = vmatprep.mubr.f32.mxu0 0.0
        %798 = vmatmul.mubr.f32.gmra.mrb[0].mxu0 %v634
        %v799 = vpop.f32.mrb[0].mxu0
        %v800 = vadd.f32 %v656, %v799
        %v801 = vpop.f32.mrb[0].mxu0
        %802 = vdwg.mxu0
        %803 = vst [vmem:[%s272] sm:$0xff] %v725
        %804 = vst [vmem:[%s272 + $0x8] sm:$0xff] %v730
        %805 = vst [vmem:[%s272 + $0x10] sm:$0xff] %v735
        %806 = vst [vmem:[%s272 + $0x18] sm:$0xff] %v740
        %807 = vst [vmem:[%s272 + $0x20] sm:$0xff] %v745
        %808 = vst [vmem:[%s272 + $0x28] sm:$0xff] %v750
        %809 = vst [vmem:[%s272 + $0x30] sm:$0xff] %v755
        %810 = vst [vmem:[%s272 + $0x38] sm:$0xff] %v760
        %811 = vst [vmem:[%s272 + $0x40] sm:$0xff] %v765
        %812 = vst [vmem:[%s272 + $0x48] sm:$0xff] %v770
        %813 = vst [vmem:[%s272 + $0x50] sm:$0xff] %v775
        %814 = vst [vmem:[%s272 + $0x58] sm:$0xff] %v780
        %815 = vst [vmem:[%s272 + $0x60] sm:$0xff] %v785
        %816 = vst [vmem:[%s272 + $0x68] sm:$0xff] %v790
        %817 = vst [vmem:[%s272 + $0x70] sm:$0xff] %v795
        %818 = vst [vmem:[%s272 + $0x78] sm:$0xff] %v800
        %s819 = sand.u32 %s141, 1
        %s820 = scalar_lea.sflag [#allocation4], %s819
        %s821 = sand.u32 %s141, 1
        %s822 = smul.addr %s821, 128
        %s823 = scalar_lea.vmem [#allocation8], %s822
        // Predicated region
        $region53: #{tpu_custom_call.1} parent=39 // pred_check
          %p824 = pneg %p151
        $region54: #{tpu_custom_call.1} parent=39 // pred_check_branch
          %826 = sbr.rel (%p824) target = $region56
        $region55: #{tpu_custom_call.1} parent=39 // pred_region
          %s827 = smul.u32 16, %s23
          %s829 = ssub.s32 2048, 2048
          %830 = vsyncadd %s820, %s829
          %s831 = smul.addr %s827, 128
          %s832 = scalar_lea.hbm %s5, %s831
          %s833 = sshll.u32 %s823, 4
          %s834 = int_to_ptr.vmem [resolvable:$true] %s833
          %839 = dma.vmem_to_hbm [thread:$0]  %s834, 2048, %s832, %s820, 128, 128, 8
        $region56: #{tpu_custom_call.1} parent=39 // pred_fallthru
          _
      $region40: #{tpu_custom_call.1} parent=5 // pred_fallthru
        _
      %p840 = scmp.le.s32.totalorder 2, %s18
      // Predicated region
      $region57: #{tpu_custom_call.1} parent=5 // pred_check
        %p841 = pneg %p840
      $region58: #{tpu_custom_call.1} parent=5 // pred_check_branch
        %843 = sbr.rel (%p841) target = $region60
      $region59: #{tpu_custom_call.1} parent=5 // pred_region
        %s844 = ssub.s32 %s18, 2
        // Predicated region
        $region61: #{tpu_custom_call.1} parent=59 // pred_check
          %p845 = pneg %p157
        $region62: #{tpu_custom_call.1} parent=59 // pred_check_branch
          %847 = sbr.rel (%p845) target = $region64
        $region63: #{tpu_custom_call.1} parent=59 // pred_region
          %s848 = sand.u32 %s142, 1
          %s849 = scalar_lea.sflag [#allocation4], %s848
          %s850 = sand.u32 %s142, 1
          %s851 = smul.addr %s850, 128
          %s852 = scalar_lea.vmem [#allocation8], %s851
          %853 = dma.done %s849, 2048
        $region64: #{tpu_custom_call.1} parent=59 // pred_fallthru
          _
      $region60: #{tpu_custom_call.1} parent=5 // pred_fallthru
        _
    $region6: #{tpu_custom_call.1} parent=1 // loop_footer
      %s22 = sadd.s32 1, %s18
    $region7: #{tpu_custom_call.1} parent=1 // loop_footer_branch
      %17 = sbr.rel target = $region3
    $region8: #{tpu_custom_call.1} parent=1 // loop_exit
      _
    %854 = vsyncpa [#allocation3], 1
    %s855 = scalar_lea.sflag [#allocation3], 1
    %856 = vsyncpa %s855, 1
    %857 = vsyncpa [#allocation6], 1
    %858 = vsyncpa [#allocation4], 1
    %s859 = scalar_lea.sflag [#allocation4], 1
    %860 = vsyncpa %s859, 1

</llo_original>
